<compile_context>
chip_gen: v5e
topology: v5e:2x2
jax: 0.10.0
libtpu: 0.0.40
codegen_flags: <defaults>
</compile_context>

<pallas_src>
import math

import jax
import jax.numpy as jnp
from jax.experimental import pallas as pl
from jax.experimental.pallas import tpu as pltpu

_MIB = 1024 * 1024


def _packing_factor(H, S):
    """Lane-packing group size g: view (B,S,H) as (B,S//g,g*H) with g*H % 128 == 0."""
    if H % 128 == 0:
        return 1
    g = 128 // math.gcd(H, 128)
    # TODO(synk): pad the sequence (or mask a ragged tail group) so lane packing
    # also applies when S is not a multiple of g; for now fall back to unpacked.
    return g if (S % g == 0) else 1


def _vmem_slab_budget():
    """Returns (physical VMEM bytes, budget for the double-buffered x slab)."""
    try:
        phys = int(pltpu.get_tpu_info().vmem_capacity_bytes)
    except Exception:
        phys = 64 * _MIB                       # conservative (v7x per-core size)
    if phys >= 96 * _MIB:                      # v5e / v6e: 128 MiB physical
        return phys, 64 * _MIB
    return phys, 24 * _MIB                     # v7x: 64 MiB physical per core


def _padded_tile_bytes(rows, cols, itemsize):
    """VMEM bytes of a 2-D tile after (sublane, 128-lane) layout padding."""
    submul = max(8, 32 // itemsize)            # 8 for f32, 16 for bf16, ...
    r = -(-rows // submul) * submul
    c = -(-cols // 128) * 128
    return r * c * itemsize


def _pick_batch_tile(B, S_p, Hp, itemsize, slab_budget):
    if B <= 8:
        # Single batch block; the (B, L) output block equals the full dims.
        # TODO(synk): for B <= 8 with very long S, split S across the two v7x
        # TensorCores (per-core partial sums + tiny combine) instead of idling one.
        return B
    per_row = max(1, 2 * _padded_tile_bytes(S_p, Hp, itemsize))   # dbl-buffered / batch row
    tb = min(B, max(8, slab_budget // per_row))
    if B >= 16:
        tb = min(tb, -(-B // 2))               # >= 2 blocks -> megacore shards both TCs
    return max(8, (tb // 8) * 8)               # multiple of 8 for the (tb, L) out block


def _pick_seq_tile(S_p, Hp, tb, itemsize, slab_budget):
    if S_p <= 8 or 2 * tb * _padded_tile_bytes(S_p, Hp, itemsize) <= slab_budget:
        return S_p
    per_srow = 2 * tb * (-(-Hp // 128) * 128) * itemsize
    ts = max(8, (slab_budget // per_srow // 8) * 8)   # largest mult-of-8 that fits
    return min(ts, max(8, (S_p // 8) * 8))            # ragged tail is masked in-kernel


def prepare_params(weight_l_2h, bias_l, seq_len):
    """One-time parameter prep (transpose / split / scale-fold / lane-pack).

    weight_l_2h: (L, 2H) nn.Linear layout; bias_l: (L,); seq_len: S of the inputs.
    Returns (w_cls (Hp, L), w_mean (Hp, L), bias (1, L)) in kernel layout, where
    Hp = g*H matches the lane-packed activation layout used by `mean_head`.
    """
    L, H2 = weight_l_2h.shape
    H = H2 // 2
    w_t = jnp.asarray(weight_l_2h, jnp.float32).T             # (2H, L)
    # S == 1 -> mean over an empty slice is NaN in PyTorch; mirror that.
    inv_rest = float("nan") if seq_len <= 1 else 1.0 / (seq_len - 1)
    w_mean = w_t[H:, :] * inv_rest                             # applied to sum(ALL tokens)
    w_cls = w_t[:H, :] - w_mean                                # folds the "- CLS" correction
    g = _packing_factor(H, seq_len)
    if g > 1:
        w_mean = jnp.tile(w_mean, (g, 1))                      # (g*H, L): sums the g groups
        w_cls = jnp.pad(w_cls, ((0, (g - 1) * H), (0, 0)))     # CLS lives in lanes [0, H)
    bias = jnp.asarray(bias_l, jnp.float32).reshape(1, L)
    return w_cls, w_mean, bias


def mean_head(nodes_b_seq_h, w_cls, w_mean, bias_1_l):
    """Pallas equivalent of Mean.forward, with params from `prepare_params`."""
    B, S, H = nodes_b_seq_h.shape
    L = bias_1_l.shape[-1]
    itemsize = jnp.dtype(nodes_b_seq_h.dtype).itemsize

    # Lane packing: (B, S, H) -> (B, S//g, g*H); contiguous reshape, no data movement.
    g = _packing_factor(H, S)
    Hp, S_p = g * H, S // g
    x = nodes_b_seq_h.reshape(B, S_p, Hp) if g > 1 else nodes_b_seq_h
    assert w_cls.shape == (Hp, L) and w_mean.shape == (Hp, L), (
        "params were prepared for a different (H, S); re-run prepare_params")

    phys_vmem, slab_budget = _vmem_slab_budget()
    tb = _pick_batch_tile(B, S_p, Hp, itemsize, slab_budget)
    ts = _pick_seq_tile(S_p, Hp, tb, itemsize, slab_budget)
    grid = (pl.cdiv(B, tb), pl.cdiv(S_p, ts))
    needs_mask = (S_p % ts) != 0

    # Explicit scoped-VMEM limit: x slab + resident weights/bias + output
    # double-buffer + scratch + headroom (v5e's 16 MiB default is too small).
    est = (2 * tb * _padded_tile_bytes(ts, Hp, itemsize)       # x tiles, double-buffered
           + 2 * 2 * _padded_tile_bytes(Hp, L, 4)              # two weight blocks
           + 2 * _padded_tile_bytes(1, L, 4)                   # bias
           + 2 * _padded_tile_bytes(tb, L, itemsize)           # output
           + 2 * _padded_tile_bytes(tb, Hp, 4))                # acc + row0 scratch
    vmem_limit = int(min(phys_vmem, max(32 * _MIB, est + 4 * _MIB)))

    def kernel(x_ref, wc_ref, wm_ref, b_ref, o_ref, acc_ref, row0_ref):
        k = pl.program_id(1)

        @pl.when(k == 0)
        def _():
            acc_ref[...] = jnp.zeros_like(acc_ref)
            # First sequence row of the first S tile: holds the CLS token
            # (in lanes [0, H) of the packed layout).
            row0_ref[...] = x_ref[:, 0, :].astype(jnp.float32)

        xt = x_ref[...]
        if needs_mask:                                         # static, trace-time switch
            valid = S_p - k * ts                               # in-range rows of this tile
            rid = jax.lax.broadcasted_iota(jnp.int32, xt.shape, 1)
            xt = jnp.where(rid < valid, xt, 0)
        # Sum over ALL tokens; the CLS correction is folded into wc_ref.
        # (bf16-on-v7x note: if a bundle dump shows the VALU slot binding, this
        #  reduction can move to the otherwise-idle MXU as a ones-vector dot.)
        acc_ref[...] += jnp.sum(xt, axis=1, dtype=jnp.float32)

        @pl.when(k == pl.num_programs(1) - 1)
        def _():
            logits = (
                jnp.dot(row0_ref[...], wc_ref[...], preferred_element_type=jnp.float32)
                + jnp.dot(acc_ref[...], wm_ref[...], preferred_element_type=jnp.float32)
                + b_ref[...]
            )                                                  # (tb, L) f32
            m = jnp.max(logits, axis=-1, keepdims=True)
            shifted = logits - m
            lse = jnp.log(jnp.sum(jnp.exp(shifted), axis=-1, keepdims=True))
            # Padded rows of a partial batch block compute garbage here; Pallas
            # discards the out-of-range slice of the output block, so that's fine.
            o_ref[...] = (shifted - lse).astype(o_ref.dtype)

    return pl.pallas_call(
        kernel,
        out_shape=jax.ShapeDtypeStruct((B, L), nodes_b_seq_h.dtype),
        grid_spec=pltpu.PrefetchScalarGridSpec(
            num_scalar_prefetch=0,
            grid=grid,
            in_specs=[
                pl.BlockSpec((tb, ts, Hp), lambda i, k: (i, k, 0)),  # pipelined x tiles
                pl.BlockSpec((Hp, L), lambda i, k: (0, 0)),          # resident weights
                pl.BlockSpec((Hp, L), lambda i, k: (0, 0)),
                pl.BlockSpec((1, L), lambda i, k: (0, 0)),           # resident bias
            ],
            out_specs=pl.BlockSpec((tb, L), lambda i, k: (i, 0)),    # resident over k
            scratch_shapes=[
                pltpu.VMEM((tb, Hp), jnp.float32),   # running sum over all tokens
                pltpu.VMEM((tb, Hp), jnp.float32),   # first sequence row (CLS)
            ],
        ),
        compiler_params=pltpu.CompilerParams(
            dimension_semantics=("parallel", "arbitrary"),
            vmem_limit_bytes=vmem_limit,
        ),
    )(x, w_cls, w_mean, bias_1_l)


def reference(nodes_b_seq_h, weight_l_2h, bias_l):
    """Pure-JAX reference mirroring the PyTorch forward."""
    cls = nodes_b_seq_h[:, 0, :]
    mean = jnp.mean(nodes_b_seq_h[:, 1:, :], axis=1)
    cat = jnp.concatenate([cls, mean], axis=1)
    logits = cat @ weight_l_2h.T + bias_l
    return jax.nn.log_softmax(logits, axis=-1)


if __name__ == "__main__":
    # Small shapes implied by the module: args.hidden, args.num_labels.
    B, S, H, L = 2, 8, 32, 4

    key = jax.random.PRNGKey(0)
    kx, kw, kb = jax.random.split(key, 3)

    x = jax.random.normal(kx, (B, S, H), dtype=jnp.float32)

    # Parameter init matching nn.Linear(hidden*2, num_labels):
    #   weight: xavier_uniform_, shape (L, 2H); bias: U(-1/sqrt(fan_in), ...).
    fan_in, fan_out = 2 * H, L
    xav_bound = (6.0 / (fan_in + fan_out)) ** 0.5
    weight = jax.random.uniform(kw, (L, 2 * H), jnp.float32, -xav_bound, xav_bound)
    b_bound = 1.0 / (fan_in ** 0.5)
    bias = jax.random.uniform(kb, (L,), jnp.float32, -b_bound, b_bound)

    # Parameter prep is done once, outside the call path.
    w_cls, w_mean, b_prep = prepare_params(weight, bias, S)

    out = mean_head(x, w_cls, w_mean, b_prep)
    jax.block_until_ready(out)

    ref = reference(x, weight, bias)
    assert out.shape == (B, L)
    assert jnp.allclose(out, ref, atol=1e-4, rtol=1e-4), (out, ref)

    print("KERNEL_OK")
</pallas_src>

<mosaic_0001>
module attributes {stable_mosaic.version = 11 : i64} {
  func.func @kernel(%arg0: i32, %arg1: i32, %arg2: memref<2x2x128xf32, #tpu.memory_space<vmem>>, %arg3: memref<128x4xf32, #tpu.memory_space<vmem>>, %arg4: memref<128x4xf32, #tpu.memory_space<vmem>>, %arg5: memref<1x4xf32, #tpu.memory_space<vmem>>, %arg6: memref<2x4xf32, #tpu.memory_space<vmem>>, %arg7: memref<2x128xf32, #tpu.memory_space<vmem>>, %arg8: memref<2x128xf32, #tpu.memory_space<vmem>>) attributes {dimension_semantics = [#tpu.dimension_semantics<parallel>, #tpu.dimension_semantics<arbitrary>], iteration_bounds = array<i64: 1, 1>, scalar_prefetch = 0 : i64, scratch_operands = 2 : i64, tpu.core_type = #tpu.core_type<tc>, window_params = [{transform_indices = @transform_0, window_bounds = array<i64: 2, 2, 128>}, {pipeline_mode = #tpu.pipeline_mode<synchronous>, transform_indices = @transform_1, window_bounds = array<i64: 128, 4>}, {pipeline_mode = #tpu.pipeline_mode<synchronous>, transform_indices = @transform_2, window_bounds = array<i64: 128, 4>}, {pipeline_mode = #tpu.pipeline_mode<synchronous>, transform_indices = @transform_3, window_bounds = array<i64: 1, 4>}, {transform_indices = @transform_4, window_bounds = array<i64: 2, 4>}]} {
    %c0_i32 = arith.constant 0 : i32
    %0 = arith.cmpi eq, %arg1, %c0_i32 : i32
    %1 = arith.extui %0 : i1 to i32
    %c0_i32_0 = arith.constant 0 : i32
    %2 = arith.cmpi ne, %1, %c0_i32_0 : i32
    scf.if %2 {
      %cst_9 = arith.constant 0.000000e+00 : f32
      %11 = vector.broadcast %cst_9 : f32 to vector<2x128xf32>
      %c0_10 = arith.constant 0 : index
      %c0_11 = arith.constant 0 : index
      %12 = vector.load %arg7[%c0_10, %c0_11] : memref<2x128xf32, #tpu.memory_space<vmem>>, vector<2x128xf32>
      tpu.vector_store %arg7[%c0_10, %c0_11], %11 {strides = array<i32>} : memref<2x128xf32, #tpu.memory_space<vmem>>, vector<2x128xf32>,
      %c0_12 = arith.constant 0 : index
      %c0_13 = arith.constant 0 : index
      %c0_14 = arith.constant 0 : index
      %13 = vector.load %arg2[%c0_12, %c0_13, %c0_14] : memref<2x2x128xf32, #tpu.memory_space<vmem>>, vector<2x1x128xf32>
      %14 = vector.shape_cast %13 : vector<2x1x128xf32> to vector<2x128xf32>
      %c0_15 = arith.constant 0 : index
      %c0_16 = arith.constant 0 : index
      %15 = vector.load %arg8[%c0_15, %c0_16] : memref<2x128xf32, #tpu.memory_space<vmem>>, vector<2x128xf32>
      tpu.vector_store %arg8[%c0_15, %c0_16], %14 {strides = array<i32>} : memref<2x128xf32, #tpu.memory_space<vmem>>, vector<2x128xf32>,
    } else {
    }
    %c0 = arith.constant 0 : index
    %c0_1 = arith.constant 0 : index
    %c0_2 = arith.constant 0 : index
    %3 = vector.load %arg2[%c0, %c0_1, %c0_2] : memref<2x2x128xf32, #tpu.memory_space<vmem>>, vector<2x2x128xf32>
    %c0_3 = arith.constant 0 : index
    %c0_4 = arith.constant 0 : index
    %4 = vector.load %arg7[%c0_3, %c0_4] : memref<2x128xf32, #tpu.memory_space<vmem>>, vector<2x128xf32>
    %cst = arith.constant dense<0.000000e+00> : vector<2x128xf32>
    %5 = vector.multi_reduction <add>, %3, %cst [1] : vector<2x2x128xf32> to vector<2x128xf32>
    %6 = arith.addf %4, %5 : vector<2x128xf32>
    %c0_5 = arith.constant 0 : index
    %c0_6 = arith.constant 0 : index
    %7 = vector.load %arg7[%c0_5, %c0_6] : memref<2x128xf32, #tpu.memory_space<vmem>>, vector<2x128xf32>
    tpu.vector_store %arg7[%c0_5, %c0_6], %6 {strides = array<i32>} : memref<2x128xf32, #tpu.memory_space<vmem>>, vector<2x128xf32>,
    %c0_i32_7 = arith.constant 0 : i32
    %8 = arith.cmpi eq, %arg1, %c0_i32_7 : i32
    %9 = arith.extui %8 : i1 to i32
    %c0_i32_8 = arith.constant 0 : i32
    %10 = arith.cmpi ne, %9, %c0_i32_8 : i32
    scf.if %10 {
      %c0_9 = arith.constant 0 : index
      %c0_10 = arith.constant 0 : index
      %11 = vector.load %arg8[%c0_9, %c0_10] : memref<2x128xf32, #tpu.memory_space<vmem>>, vector<2x128xf32>
      %c0_11 = arith.constant 0 : index
      %c0_12 = arith.constant 0 : index
      %12 = vector.load %arg3[%c0_11, %c0_12] : memref<128x4xf32, #tpu.memory_space<vmem>>, vector<128x4xf32>
      %cst_13 = arith.constant dense<0.000000e+00> : vector<2x4xf32>
      %13 = tpu.matmul %11, %12, %cst_13 {dimension_numbers = #tpu.dot_dimension_numbers<[1], [0], [0], [1], [0, 0, 1, 1], [], []>} : vector<2x128xf32>, vector<128x4xf32>, vector<2x4xf32> -> vector<2x4xf32>
      %c0_14 = arith.constant 0 : index
      %c0_15 = arith.constant 0 : index
      %14 = vector.load %arg7[%c0_14, %c0_15] : memref<2x128xf32, #tpu.memory_space<vmem>>, vector<2x128xf32>
      %c0_16 = arith.constant 0 : index
      %c0_17 = arith.constant 0 : index
      %15 = vector.load %arg4[%c0_16, %c0_17] : memref<128x4xf32, #tpu.memory_space<vmem>>, vector<128x4xf32>
      %cst_18 = arith.constant dense<0.000000e+00> : vector<2x4xf32>
      %16 = tpu.matmul %14, %15, %cst_18 {dimension_numbers = #tpu.dot_dimension_numbers<[1], [0], [0], [1], [0, 0, 1, 1], [], []>} : vector<2x128xf32>, vector<128x4xf32>, vector<2x4xf32> -> vector<2x4xf32>
      %17 = arith.addf %13, %16 : vector<2x4xf32>
      %c0_19 = arith.constant 0 : index
      %c0_20 = arith.constant 0 : index
      %18 = vector.load %arg5[%c0_19, %c0_20] : memref<1x4xf32, #tpu.memory_space<vmem>>, vector<1x4xf32>
      %19 = vector.broadcast %18 : vector<1x4xf32> to vector<2x4xf32>
      %20 = arith.addf %17, %19 : vector<2x4xf32>
      %cst_21 = arith.constant dense<0xFF800000> : vector<2xf32>
      %21 = vector.multi_reduction <maximumf>, %20, %cst_21 [1] : vector<2x4xf32> to vector<2xf32>
      %22 = vector.shape_cast %21 : vector<2xf32> to vector<2x1xf32>
      %23 = vector.broadcast %22 : vector<2x1xf32> to vector<2x4xf32>
      %24 = arith.subf %20, %23 : vector<2x4xf32>
      %25 = math.exp %24 : vector<2x4xf32>
      %cst_22 = arith.constant dense<0.000000e+00> : vector<2xf32>
      %26 = vector.multi_reduction <add>, %25, %cst_22 [1] : vector<2x4xf32> to vector<2xf32>
      %27 = vector.shape_cast %26 : vector<2xf32> to vector<2x1xf32>
      %28 = math.log %27 : vector<2x1xf32>
      %29 = vector.broadcast %28 : vector<2x1xf32> to vector<2x4xf32>
      %30 = arith.subf %24, %29 : vector<2x4xf32>
      %c0_23 = arith.constant 0 : index
      %c0_24 = arith.constant 0 : index
      %31 = vector.load %arg6[%c0_23, %c0_24] : memref<2x4xf32, #tpu.memory_space<vmem>>, vector<2x4xf32>
      tpu.vector_store %arg6[%c0_23, %c0_24], %30 {strides = array<i32>} : memref<2x4xf32, #tpu.memory_space<vmem>>, vector<2x4xf32>,
    } else {
    }
    return
  }
  func.func @transform_0(%arg0: i32, %arg1: i32) -> (i32, i32, i32) {
    %c0_i32 = arith.constant 0 : i32
    %c0_i32_0 = arith.constant 0 : i32
    return %arg0, %arg1, %c0_i32 : i32, i32, i32
  }
  func.func @transform_1(%arg0: i32, %arg1: i32) -> (i32, i32) {
    %c0_i32 = arith.constant 0 : i32
    %c0_i32_0 = arith.constant 0 : i32
    %c0_i32_1 = arith.constant 0 : i32
    return %c0_i32, %c0_i32_0 : i32, i32
  }
  func.func @transform_2(%arg0: i32, %arg1: i32) -> (i32, i32) {
    %c0_i32 = arith.constant 0 : i32
    %c0_i32_0 = arith.constant 0 : i32
    %c0_i32_1 = arith.constant 0 : i32
    return %c0_i32, %c0_i32_0 : i32, i32
  }
  func.func @transform_3(%arg0: i32, %arg1: i32) -> (i32, i32) {
    %c0_i32 = arith.constant 0 : i32
    %c0_i32_0 = arith.constant 0 : i32
    %c0_i32_1 = arith.constant 0 : i32
    return %c0_i32, %c0_i32_0 : i32, i32
  }
  func.func @transform_4(%arg0: i32, %arg1: i32) -> (i32, i32) {
    %c0_i32 = arith.constant 0 : i32
    %c0_i32_0 = arith.constant 0 : i32
    return %arg0, %c0_i32 : i32, i32
  }
}

</mosaic_0001>

<llo_original>
// kernel: tpu_custom_call.1
$region0: #{tpu_custom_call.1}
  #allocation0 [shape = 'u32[]', space=smem, size = 0x4, offset = 0x4, fixed_abs, tag = 'smem constant byte address 0x4 - core index']
  #allocation1 [shape = 'u32[72,128]{1,0:T(1,128)}', space=vmem, size = 0x9000, scoped, tag = 'internal scratch']
  #allocation2 [shape = 'f32[2,128]{1,0:T(2,128)}', space=vmem, size = 0x400, scoped, tag = 'scratch operand']
  #allocation3 [shape = 'f32[2,128]{1,0:T(2,128)}', space=vmem, size = 0x400, scoped, tag = 'scratch operand']
  %s0 = inlined_call_operand.vmem [shape: f32[2,2,128], index: 0, kind: input, shape index: {}]
  %s1 = inlined_call_operand.vmem [shape: f32[128,4], index: 1, kind: input, shape index: {}]
  %s2 = inlined_call_operand.vmem [shape: f32[128,4], index: 2, kind: input, shape index: {}]
  %s3 = inlined_call_operand.vmem [shape: f32[1,4], index: 3, kind: input, shape index: {}]
  %s4 = inlined_call_operand.hbm [shape: f32[2,4], index: 4, kind: output, shape index: {}]
  %s5 = sld [smem:[#allocation0]]
  $region34: #{tpu_custom_call.1} parent=0
    _
  %s7 = ssub.s32 1, %s5
  %s8 = scalar_select 0, %s7, %s5
  $region1: #{tpu_custom_call.1} parent=0
    #allocation4 [shape = 'u8[1024]{0}', space=vmem, size = 0x400, scoped, tag = 'output window, operand 0, single buffered']
    #allocation5 [shape = 's32[1]{0}', space=sflag, size = 0x4, scoped, tag = 'scoped memory for tpu_custom_call.1']
    %9 = vsyncpa [#allocation5], 0
    // Predicated region
    $region2: #{tpu_custom_call.1} parent=1 // pred_check
      _
    $region3: #{tpu_custom_call.1} parent=1 // pred_check_branch
      %11 = sbr.rel (0) target = $region5
    $region4: #{tpu_custom_call.1} parent=1 // pred_region
      _
    $region5: #{tpu_custom_call.1} parent=1 // pred_fallthru
      _
    // Predicated region
    $region6: #{tpu_custom_call.1} parent=1 // pred_check
      _
    $region7: #{tpu_custom_call.1} parent=1 // pred_check_branch
      %13 = sbr.rel (0) target = $region9
    $region8: #{tpu_custom_call.1} parent=1 // pred_region
      _
    $region9: #{tpu_custom_call.1} parent=1 // pred_fallthru
      _
    // Predicated region
    $region10: #{tpu_custom_call.1} parent=1 // pred_check
      _
    $region11: #{tpu_custom_call.1} parent=1 // pred_check_branch
      %15 = sbr.rel (0) target = $region13
    $region12: #{tpu_custom_call.1} parent=1 // pred_region
      _
    $region13: #{tpu_custom_call.1} parent=1 // pred_fallthru
      _
    // Predicated region
    $region14: #{tpu_custom_call.1} parent=1 // pred_check
      _
    $region15: #{tpu_custom_call.1} parent=1 // pred_check_branch
      %17 = sbr.rel (0) target = $region17
    $region16: #{tpu_custom_call.1} parent=1 // pred_region
      _
    $region17: #{tpu_custom_call.1} parent=1 // pred_fallthru
      _
    %p18 = scmp.eq.s32.totalorder 0, 0
    // Predicated region
    $region18: #{tpu_custom_call.1} parent=1 // pred_check
      %p19 = pneg %p18
    $region19: #{tpu_custom_call.1} parent=1 // pred_check_branch
      %21 = sbr.rel (%p19) target = $region21
    $region20: #{tpu_custom_call.1} parent=1 // pred_region
      %22 = vst [vmem:[#allocation2] sm:$0x3] 0.0
      %v23 = vld [vmem:[%s0] sm:$0x1]
      %v24 = vld [vmem:[%s0 + $0x2] sm:$0x1]
      %v27 = vrot.slane %v24, 7
      %vm28 = vcmask 1041409
      %v29 = vsel %vm28, %v27, %v23
      %31 = vst [vmem:[#allocation3] sm:$0x3] %v29
    $region21: #{tpu_custom_call.1} parent=1 // pred_fallthru
      _
    %v32 = vld [vmem:[%s0] sm:$0x3]
    %v33 = vld [vmem:[%s0 + $0x2] sm:$0x3]
    %v34 = vld [vmem:[#allocation2] sm:$0x3]
    %vm35 = vcmask 1041408
    %v36 = vsel %vm35, %v32, 0.0
    %v37 = vrot.slane %v36, 4
    %v38 = vadd.f32 %v36, %v37
    %v39 = vrot.slane %v38, 2
    %v40 = vadd.f32 %v38, %v39
    %v41 = vrot.slane %v40, 1
    %v42 = vadd.f32 %v40, %v41
    %v43 = vsel %vm35, %v33, 0.0
    %v44 = vrot.slane %v43, 4
    %v45 = vadd.f32 %v43, %v44
    %v46 = vrot.slane %v45, 2
    %v47 = vadd.f32 %v45, %v46
    %v48 = vrot.slane %v47, 1
    %v49 = vadd.f32 %v47, %v48
    %vm52 = vcmask 1041409
    %v53 = vsel %vm52, %v49, %v42
    %v55 = vadd.f32 %v34, %v53
    %56 = vst [vmem:[#allocation2] sm:$0x3] %v55
    // Predicated region
    $region22: #{tpu_custom_call.1} parent=1 // pred_check
      %p57 = pneg %p18
    $region23: #{tpu_custom_call.1} parent=1 // pred_check_branch
      %59 = sbr.rel (%p57) target = $region25
    $region24: #{tpu_custom_call.1} parent=1 // pred_region
      %v60 = vld [vmem:[#allocation3] sm:$0x3]
      %v61 = vld [vmem:[%s1] sm:$0xff]
      %v62 = vld [vmem:[%s1 + $0x8] sm:$0xff]
      %v63 = vld [vmem:[%s1 + $0x10] sm:$0xff]
      %v64 = vld [vmem:[%s1 + $0x18] sm:$0xff]
      %v65 = vld [vmem:[%s1 + $0x20] sm:$0xff]
      %v66 = vld [vmem:[%s1 + $0x28] sm:$0xff]
      %v67 = vld [vmem:[%s1 + $0x30] sm:$0xff]
      %v68 = vld [vmem:[%s1 + $0x38] sm:$0xff]
      %v69 = vld [vmem:[%s1 + $0x40] sm:$0xff]
      %v70 = vld [vmem:[%s1 + $0x48] sm:$0xff]
      %v71 = vld [vmem:[%s1 + $0x50] sm:$0xff]
      %v72 = vld [vmem:[%s1 + $0x58] sm:$0xff]
      %v73 = vld [vmem:[%s1 + $0x60] sm:$0xff]
      %v74 = vld [vmem:[%s1 + $0x68] sm:$0xff]
      %v75 = vld [vmem:[%s1 + $0x70] sm:$0xff]
      %v76 = vld [vmem:[%s1 + $0x78] sm:$0xff]
      %v77 = vld [vmem:[#allocation2] sm:$0x3]
      %v78 = vld [vmem:[%s2] sm:$0xff]
      %v79 = vld [vmem:[%s2 + $0x8] sm:$0xff]
      %v80 = vld [vmem:[%s2 + $0x10] sm:$0xff]
      %v81 = vld [vmem:[%s2 + $0x18] sm:$0xff]
      %v82 = vld [vmem:[%s2 + $0x20] sm:$0xff]
      %v83 = vld [vmem:[%s2 + $0x28] sm:$0xff]
      %v84 = vld [vmem:[%s2 + $0x30] sm:$0xff]
      %v85 = vld [vmem:[%s2 + $0x38] sm:$0xff]
      %v86 = vld [vmem:[%s2 + $0x40] sm:$0xff]
      %v87 = vld [vmem:[%s2 + $0x48] sm:$0xff]
      %v88 = vld [vmem:[%s2 + $0x50] sm:$0xff]
      %v89 = vld [vmem:[%s2 + $0x58] sm:$0xff]
      %v90 = vld [vmem:[%s2 + $0x60] sm:$0xff]
      %v91 = vld [vmem:[%s2 + $0x68] sm:$0xff]
      %v92 = vld [vmem:[%s2 + $0x70] sm:$0xff]
      %v93 = vld [vmem:[%s2 + $0x78] sm:$0xff]
      %94 = vmatpush.msra.mxu0 %v93
      %95 = vmatpush.msra.mxu0 %v92
      %96 = vmatpush.msra.mxu0 %v91
      %97 = vmatpush.msra.mxu0 %v90
      %98 = vmatpush.msra.mxu0 %v89
      %99 = vmatpush.msra.mxu0 %v88
      %100 = vmatpush.msra.mxu0 %v87
      %101 = vmatpush.msra.mxu0 %v86
      %102 = vmatpush.msra.mxu0 %v85
      %103 = vmatpush.msra.mxu0 %v84
      %104 = vmatpush.msra.mxu0 %v83
      %105 = vmatpush.msra.mxu0 %v82
      %106 = vmatpush.msra.mxu0 %v81
      %107 = vmatpush.msra.mxu0 %v80
      %108 = vmatpush.msra.mxu0 %v79
      %109 = vmatpush.msra.mxu0 %v78
      %110 = vmatmul.f32.gmra.mxu0 %v77
      %v111 = vpop.f32.mrf.mxu0
      %v112 = vadd.f32 0.0, %v111
      %113 = vdwg.mxu0
      %114 = vmatpush.msra.mxu0 %v76
      %115 = vmatpush.msra.mxu0 %v75
      %116 = vmatpush.msra.mxu0 %v74
      %117 = vmatpush.msra.mxu0 %v73
      %118 = vmatpush.msra.mxu0 %v72
      %119 = vmatpush.msra.mxu0 %v71
      %120 = vmatpush.msra.mxu0 %v70
      %121 = vmatpush.msra.mxu0 %v69
      %122 = vmatpush.msra.mxu0 %v68
      %123 = vmatpush.msra.mxu0 %v67
      %124 = vmatpush.msra.mxu0 %v66
      %125 = vmatpush.msra.mxu0 %v65
      %126 = vmatpush.msra.mxu0 %v64
      %127 = vmatpush.msra.mxu0 %v63
      %128 = vmatpush.msra.mxu0 %v62
      %129 = vmatpush.msra.mxu0 %v61
      %130 = vmatmul.f32.gmra.mxu0 %v60
      %v131 = vpop.f32.mrf.mxu0
      %v132 = vadd.f32 %v112, %v131
      %133 = vdwg.mxu0
      %v134 = vld [vmem:[%s3] sm:$0x1]
      %v136 = vperm.slane %v134, 0
      %v138 = vadd.f32 %v132, %v136
      %vm139 = vcmask 25600
      %v140 = vsel %vm139, %v138, -inf
      %141 = vmax.xlane.f32.xlu0 %v140
      %v142 = vpop.xlane.xlu0 %141
      %v143 = vsub.f32 %v138, %v142
      %v144 = vmul.f32 %v143, 1.442695
      %v145 = vpow.pop %v144
      %v146 = vsel %vm139, %v145, 0.0
      %147 = vadd.xlane.f32.xlu0 %v146
      %v148 = vpop.xlane.xlu0 %147
      %v149 = vlog2.pop %v148
      %v150 = vmul.f32 %v149, 0.6931472
      %v151 = vsub.f32 %v143, %v150
      %152 = vst.msk [vmem:[#allocation4] sm:$0x3] %vm139, %v151
    $region25: #{tpu_custom_call.1} parent=1 // pred_fallthru
      _
    // Predicated region
    $region26: #{tpu_custom_call.1} parent=1 // pred_check
      _
    $region27: #{tpu_custom_call.1} parent=1 // pred_check_branch
      %154 = sbr.rel (0) target = $region29
    $region28: #{tpu_custom_call.1} parent=1 // pred_region
      %156 = vsyncadd [#allocation5], 0
      %s158 = sshll.u32 [#allocation4], 4
      %s159 = int_to_ptr.vmem [resolvable:$true] %s158
      %s160 = sshll.u32 %s4, 4
      %s161 = int_to_ptr.hbm [resolvable:$true] %s160
      %163 = dma.vmem_to_hbm [thread:$0]  %s159, 32, %s161, [#allocation5]
    $region29: #{tpu_custom_call.1} parent=1 // pred_fallthru
      _
    // Predicated region
    $region30: #{tpu_custom_call.1} parent=1 // pred_check
      _
    $region31: #{tpu_custom_call.1} parent=1 // pred_check_branch
      %165 = sbr.rel (0) target = $region33
    $region32: #{tpu_custom_call.1} parent=1 // pred_region
      %167 = dma.done [#allocation5], 32
    $region33: #{tpu_custom_call.1} parent=1 // pred_fallthru
      _
    %168 = vsyncpa [#allocation5], 1

</llo_original>
